<compile_context>
chip_gen: v6e
topology: v6e:2x2x1
jax: 0.10.0
libtpu: 0.0.40
codegen_flags: <defaults>
</compile_context>

<pallas_src>
import math

import jax
import jax.numpy as jnp
from jax.experimental import pallas as pl
from jax.experimental.pallas import tpu as pltpu


def _rope_kernel(a_ref, off_ref, out_ref):
    """Writes one (tile_rows, width) lane-dense slab tile.

    a_ref   : (1, width) = R * inv_freq_full, tiled R times along the lane axis
    off_ref : (1, width) = (lane // out_dim) * inv_freq_full
    out[s, lane] = (pid*tile_rows + s) * a[lane] + off[lane]
                 = global_row(lane) * inv_freq_full[lane % out_dim]
    """
    tile_rows, width = out_ref.shape
    a = a_ref[...]
    # Per-tile base row folded into one (1, width) row; hoisted out of the
    # per-element work (costs width/128 vregs once per tile).
    base = (pl.program_id(0) * tile_rows).astype(jnp.float32) * a + off_ref[...]
    # Row index inside the tile.  int32 iota + cast (float iota is not a safe
    # Mosaic lowering); the tile offset already lives in `base`, so per output
    # vreg this is: iota, convert, mul, add.
    s = jax.lax.broadcasted_iota(jnp.int32, (tile_rows, width), 0).astype(jnp.float32)
    out_ref[...] = s * a + base


_TILE_TARGET_BYTES = 2 * 1024 * 1024   # ~2 MiB per output tile (4 MiB double-buffered)
_MIN_LANES = 512                        # lane-dense target for the folded output


def _fold_factor(out_dim: int) -> int:
    """Smallest R such that R*out_dim is a multiple of 128 and >= _MIN_LANES."""
    r = 128 // math.gcd(out_dim, 128)
    while r * out_dim < _MIN_LANES:
        r *= 2
    return r


def rotary_embedding(seq_len: int, dim: int) -> jnp.ndarray:
    """Returns (seq_len, 2*ceil(dim/2)) float32 array matching RotaryEmbedding.forward."""
    half = (dim + 1) // 2              # len(arange(0, dim, 2))
    out_dim = 2 * half                 # output feature width (== dim for even dim)

    # Deterministic "buffer", identical to the PyTorch module.
    inv_freq = 1.0 / (10000.0 ** (jnp.arange(0, dim, 2, dtype=jnp.float32) / dim))
    inv_freq_full = jnp.concatenate([inv_freq, inv_freq], axis=-1)   # (out_dim,)

    if seq_len == 0:
        # matches torch.empty((0, 2*half)) — no kernel launch needed
        return jnp.empty((0, out_dim), dtype=jnp.float32)

    # ---- lane-dense folding: pack R consecutive rows into the lane axis ----
    R = _fold_factor(out_dim)
    width = R * out_dim                # multiple of 128, >= 512 lanes
    slab_rows = -(-seq_len // R)       # ceil(seq_len / R)
    seq_pad = slab_rows * R

    # (1, width) constants consumed by the kernel (resident across grid steps).
    a = (jnp.tile(inv_freq_full, R) * jnp.float32(R)).reshape(1, width)
    lane_off = (jnp.arange(R, dtype=jnp.float32)[:, None]
                * inv_freq_full[None, :]).reshape(1, width)

    # ---- row tiling: fat tiles to amortize the per-grid-step overhead ------
    rows_cap = max(8, (_TILE_TARGET_BYTES // (width * 4)) // 8 * 8)
    tile_rows = slab_rows if slab_rows <= rows_cap else rows_cap
    grid = (pl.cdiv(slab_rows, tile_rows),)

    slab = pl.pallas_call(
        _rope_kernel,
        out_shape=jax.ShapeDtypeStruct((slab_rows, width), jnp.float32),
        grid=grid,
        in_specs=[
            pl.BlockSpec((1, width), lambda i: (0, 0)),
            pl.BlockSpec((1, width), lambda i: (0, 0)),
        ],
        out_specs=pl.BlockSpec((tile_rows, width), lambda i: (i, 0)),
        compiler_params=pltpu.CompilerParams(
            dimension_semantics=("parallel",)),
    )(a, lane_off)

    # Free re-interpretation (identical row-major layout), then drop padded rows.
    out = slab.reshape(seq_pad, out_dim)
    if seq_pad != seq_len:
        out = out[:seq_len]
    return out


def _reference(seq_len: int, dim: int) -> jnp.ndarray:
    inv_freq = 1.0 / (10000.0 ** (jnp.arange(0, dim, 2, dtype=jnp.float32) / dim))
    t = jnp.arange(seq_len, dtype=jnp.float32)
    freqs = jnp.einsum("i,j->ij", t, inv_freq)
    return jnp.concatenate([freqs, freqs], axis=-1)


if __name__ == "__main__":
    # Module has no random parameters; key included for convention only.
    _ = jax.random.PRNGKey(0)

    # Small deterministic example: head dim 32, seq_len 8.
    dim, seq_len = 32, 8
    out = jax.block_until_ready(rotary_embedding(seq_len, dim))
    ref = _reference(seq_len, dim)
    assert out.shape == (seq_len, dim)
    assert jnp.allclose(out, ref, rtol=1e-5, atol=1e-6), "mismatch (dim=32, seq=8)"

    # Row-folded path with seq_len not a multiple of the fold factor.
    out2 = jax.block_until_ready(rotary_embedding(2056, 32))
    assert out2.shape == (2056, 32)
    assert jnp.allclose(out2, _reference(2056, 32), rtol=1e-5, atol=1e-6), \
        "mismatch (dim=32, seq=2056)"

    # Multi-tile grid + partial boundary tile + padded-row slice.
    out3 = jax.block_until_ready(rotary_embedding(9001, 128))
    assert out3.shape == (9001, 128)
    assert jnp.allclose(out3, _reference(9001, 128), rtol=1e-5, atol=1e-6), \
        "mismatch (dim=128, seq=9001)"

    print("KERNEL_OK")
</pallas_src>

<mosaic_0001>
module attributes {stable_mosaic.version = 11 : i64} {
  func.func @_rope_kernel(%arg0: i32, %arg1: memref<1x512xf32, #tpu.memory_space<vmem>>, %arg2: memref<1x512xf32, #tpu.memory_space<vmem>>, %arg3: memref<1x512xf32, #tpu.memory_space<vmem>>) attributes {dimension_semantics = [#tpu.dimension_semantics<parallel>], iteration_bounds = array<i64: 1>, scalar_prefetch = 0 : i64, scratch_operands = 0 : i64, tpu.core_type = #tpu.core_type<tc>, window_params = [{pipeline_mode = #tpu.pipeline_mode<synchronous>, transform_indices = @transform_0, window_bounds = array<i64: 1, 512>}, {pipeline_mode = #tpu.pipeline_mode<synchronous>, transform_indices = @transform_1, window_bounds = array<i64: 1, 512>}, {transform_indices = @transform_2, window_bounds = array<i64: 1, 512>}]} {
    %c0 = arith.constant 0 : index
    %c0_0 = arith.constant 0 : index
    %0 = vector.load %arg1[%c0, %c0_0] : memref<1x512xf32, #tpu.memory_space<vmem>>, vector<1x512xf32>
    %c1_i32 = arith.constant 1 : i32
    %1 = arith.muli %arg0, %c1_i32 : i32
    %2 = arith.sitofp %1 : i32 to f32
    %3 = vector.broadcast %2 : f32 to vector<1x512xf32>
    %4 = arith.mulf %3, %0 : vector<1x512xf32>
    %c0_1 = arith.constant 0 : index
    %c0_2 = arith.constant 0 : index
    %5 = vector.load %arg2[%c0_1, %c0_2] : memref<1x512xf32, #tpu.memory_space<vmem>>, vector<1x512xf32>
    %6 = arith.addf %4, %5 : vector<1x512xf32>
    %7 = tpu.iota {dimensions = array<i32: 0>} : vector<1x512xi32>
    %8 = arith.sitofp %7 : vector<1x512xi32> to vector<1x512xf32>
    %9 = arith.mulf %8, %0 : vector<1x512xf32>
    %10 = arith.addf %9, %6 : vector<1x512xf32>
    %c0_3 = arith.constant 0 : index
    %c0_4 = arith.constant 0 : index
    %11 = vector.load %arg3[%c0_3, %c0_4] : memref<1x512xf32, #tpu.memory_space<vmem>>, vector<1x512xf32>
    tpu.vector_store %arg3[%c0_3, %c0_4], %10 {strides = array<i32>} : memref<1x512xf32, #tpu.memory_space<vmem>>, vector<1x512xf32>,
    return
  }
  func.func @transform_0(%arg0: i32) -> (i32, i32) {
    %c0_i32 = arith.constant 0 : i32
    %c0_i32_0 = arith.constant 0 : i32
    %c0_i32_1 = arith.constant 0 : i32
    return %c0_i32, %c0_i32_0 : i32, i32
  }
  func.func @transform_1(%arg0: i32) -> (i32, i32) {
    %c0_i32 = arith.constant 0 : i32
    %c0_i32_0 = arith.constant 0 : i32
    %c0_i32_1 = arith.constant 0 : i32
    return %c0_i32, %c0_i32_0 : i32, i32
  }
  func.func @transform_2(%arg0: i32) -> (i32, i32) {
    %c0_i32 = arith.constant 0 : i32
    %c0_i32_0 = arith.constant 0 : i32
    return %arg0, %c0_i32 : i32, i32
  }
}

</mosaic_0001>

<llo_original>
// kernel: tpu_custom_call.1
$region0: #{tpu_custom_call.1}
  #allocation0 [shape = 'u32[]', space=smem, size = 0x4, offset = 0x4, fixed_abs, tag = 'smem constant byte address 0x4 - core index']
  #allocation1 [shape = 'u32[144,128]{1,0:T(1,128)}', space=vmem, size = 0x12000, scoped, tag = 'internal scratch']
  %s0 = inlined_call_operand.hbm [shape: f32[1,512], index: 0, kind: input, shape index: {}]
  %s1 = inlined_call_operand.hbm [shape: f32[1,512], index: 1, kind: input, shape index: {}]
  %s2 = inlined_call_operand.hbm [shape: f32[1,512], index: 2, kind: output, shape index: {}]
  %s3 = sld [smem:[#allocation0]]
  $region26: #{tpu_custom_call.1} parent=0
    _
  %s5 = ssub.s32 1, %s3
  %s6 = scalar_select 0, %s5, %s3
  $region1: #{tpu_custom_call.1} parent=0
    #allocation2 [shape = 'u8[2048]{0}', space=vmem, size = 0x800, scoped, tag = 'input window, operand 0, single buffered']
    #allocation3 [shape = 's32[1]{0}', space=sflag, size = 0x4, scoped, tag = 'scoped memory for tpu_custom_call.1']
    #allocation4 [shape = 's32[1]{0}', space=sflag, size = 0x4, scoped, tag = 'scoped memory for tpu_custom_call.1']
    #allocation5 [shape = 'u8[2048]{0}', space=vmem, size = 0x800, scoped, tag = 'input window, operand 1, single buffered']
    #allocation6 [shape = 's32[1]{0}', space=sflag, size = 0x4, scoped, tag = 'scoped memory for tpu_custom_call.1']
    #allocation7 [shape = 'u8[2048]{0}', space=vmem, size = 0x800, scoped, tag = 'output window, operand 0, single buffered']
    %7 = vsyncpa [#allocation3], 0
    %8 = vsyncpa [#allocation6], 0
    %9 = vsyncpa [#allocation4], 0
    // Predicated region
    $region2: #{tpu_custom_call.1} parent=1 // pred_check
      _
    $region3: #{tpu_custom_call.1} parent=1 // pred_check_branch
      %11 = sbr.rel (0) target = $region5
    $region4: #{tpu_custom_call.1} parent=1 // pred_region
      %s13 = ssub.s32 64, 64
      %14 = vsyncadd [#allocation3], %s13
      %s16 = sshll.u32 [#allocation2], 4
      %s17 = int_to_ptr.vmem [resolvable:$true] %s16
      %19 = dma.hbm_to_vmem [thread:$0]  %s0, 64, %s17, [#allocation3]
    $region5: #{tpu_custom_call.1} parent=1 // pred_fallthru
      _
    // Predicated region
    $region6: #{tpu_custom_call.1} parent=1 // pred_check
      _
    $region7: #{tpu_custom_call.1} parent=1 // pred_check_branch
      %21 = sbr.rel (0) target = $region9
    $region8: #{tpu_custom_call.1} parent=1 // pred_region
      %s23 = ssub.s32 64, 64
      %24 = vsyncadd [#allocation6], %s23
      %s26 = sshll.u32 [#allocation5], 4
      %s27 = int_to_ptr.vmem [resolvable:$true] %s26
      %29 = dma.hbm_to_vmem [thread:$0]  %s1, 64, %s27, [#allocation6]
    $region9: #{tpu_custom_call.1} parent=1 // pred_fallthru
      _
    // Predicated region
    $region10: #{tpu_custom_call.1} parent=1 // pred_check
      _
    $region11: #{tpu_custom_call.1} parent=1 // pred_check_branch
      %31 = sbr.rel (0) target = $region13
    $region12: #{tpu_custom_call.1} parent=1 // pred_region
      %32 = dma.done [#allocation3], 64
    $region13: #{tpu_custom_call.1} parent=1 // pred_fallthru
      _
    // Predicated region
    $region14: #{tpu_custom_call.1} parent=1 // pred_check
      _
    $region15: #{tpu_custom_call.1} parent=1 // pred_check_branch
      %34 = sbr.rel (0) target = $region17
    $region16: #{tpu_custom_call.1} parent=1 // pred_region
      %35 = dma.done [#allocation6], 64
    $region17: #{tpu_custom_call.1} parent=1 // pred_fallthru
      _
    %v36 = vld [vmem:[#allocation2] sm:$0xf]
    %s37 = scvt.s32.f32 0
    %v38 = vstv %s37
    %v39 = vmul.f32 %v38, %v36
    %v40 = vld [vmem:[#allocation5] sm:$0xf]
    %v41 = vadd.f32 %v39, %v40
    %v42 = vlaneseq
    %v43 = vshrl.u32 %v42, 7
    %v44 = vcvt.s32.f32 %v43
    %v46 = vlaneseq
    %v47 = vshrl.u32 %v46, 7
    %v48 = vsub.s32 0, %v47
    %v49 = vrot.slane %v36, %v48
    %v50 = vlaneseq
    %v51 = vshrl.u32 %v50, 7
    %v52 = vsub.s32 1, %v51
    %v53 = vrot.slane %v36, %v52
    %v54 = vlaneseq
    %v55 = vshrl.u32 %v54, 7
    %v56 = vsub.s32 2, %v55
    %v57 = vrot.slane %v36, %v56
    %v58 = vlaneseq
    %v59 = vshrl.u32 %v58, 7
    %v60 = vsub.s32 3, %v59
    %v61 = vrot.slane %v36, %v60
    %v66 = vmul.f32 %v44, %v49
    %v67 = vmul.f32 %v44, %v53
    %v68 = vmul.f32 %v44, %v57
    %v69 = vmul.f32 %v44, %v61
    %v71 = vlaneseq
    %v72 = vshrl.u32 %v71, 7
    %v73 = vsub.s32 0, %v72
    %v74 = vrot.slane %v41, %v73
    %v75 = vlaneseq
    %v76 = vshrl.u32 %v75, 7
    %v77 = vsub.s32 1, %v76
    %v78 = vrot.slane %v41, %v77
    %v79 = vlaneseq
    %v80 = vshrl.u32 %v79, 7
    %v81 = vsub.s32 2, %v80
    %v82 = vrot.slane %v41, %v81
    %v83 = vlaneseq
    %v84 = vshrl.u32 %v83, 7
    %v85 = vsub.s32 3, %v84
    %v86 = vrot.slane %v41, %v85
    %v91 = vadd.f32 %v66, %v74
    %v92 = vadd.f32 %v67, %v78
    %v93 = vadd.f32 %v68, %v82
    %v94 = vadd.f32 %v69, %v86
    %v99 = vcombine.low %v91, %v92
    %v100 = vcombine.low %v93, %v94
    %v102 = vunpack.c.l.s4 1966171168
    %v103 = vunpack.c.0.s8 %v102
    %v104 = vlaneseq
    %v105 = vshrl.u32 %v104, 7
    %v106 = vsub.s32 %v103, %v105
    %v107 = vrot.slane %v99, %v106
    %v109 = vunpack.c.l.s4 1966171168
    %v110 = vunpack.c.0.s8 %v109
    %v111 = vlaneseq
    %v112 = vshrl.u32 %v111, 7
    %v113 = vsub.s32 %v110, %v112
    %v114 = vrot.slane %v100, %v113
    %v115 = vcombine.low %v107, %v114
    %v117 = vunpack.c.l.s4 1966171168
    %v118 = vunpack.c.0.s8 %v117
    %v119 = vlaneseq
    %v120 = vshrl.u32 %v119, 7
    %v121 = vsub.s32 %v118, %v120
    %v122 = vrot.slane %v115, %v121
    %v124 = vlaneseq
    %vm125 = vcmp.ge.s32.totalorder %v124, 0
    %vm126 = vcmp.lt.s32.totalorder %v124, 512
    %vm127 = vmand %vm125, %vm126
    %128 = vst.msk [vmem:[#allocation7] sm:$0xf] %vm127, %v122
    // Predicated region
    $region18: #{tpu_custom_call.1} parent=1 // pred_check
      _
    $region19: #{tpu_custom_call.1} parent=1 // pred_check_branch
      %130 = sbr.rel (0) target = $region21
    $region20: #{tpu_custom_call.1} parent=1 // pred_region
      %s132 = ssub.s32 64, 64
      %133 = vsyncadd [#allocation4], %s132
      %s135 = sshll.u32 [#allocation7], 4
      %s136 = int_to_ptr.vmem [resolvable:$true] %s135
      %138 = dma.vmem_to_hbm [thread:$0]  %s136, 64, %s2, [#allocation4]
    $region21: #{tpu_custom_call.1} parent=1 // pred_fallthru
      _
    // Predicated region
    $region22: #{tpu_custom_call.1} parent=1 // pred_check
      _
    $region23: #{tpu_custom_call.1} parent=1 // pred_check_branch
      %140 = sbr.rel (0) target = $region25
    $region24: #{tpu_custom_call.1} parent=1 // pred_region
      %141 = dma.done [#allocation4], 64
    $region25: #{tpu_custom_call.1} parent=1 // pred_fallthru
      _
    %142 = vsyncpa [#allocation3], 1
    %143 = vsyncpa [#allocation6], 1
    %144 = vsyncpa [#allocation4], 1

</llo_original>
